<compile_context>
chip_gen: v5e
topology: v5e:2x2
jax: 0.10.0
libtpu: 0.0.40
codegen_flags: <defaults>
</compile_context>

<pallas_src>
import functools

import jax
import jax.numpy as jnp
from jax.experimental import pallas as pl
from jax.experimental.pallas import tpu as pltpu

EPS = 1e-5  # PyTorch LayerNorm default


def _round_up(x, m):
    return ((x + m - 1) // m) * m


def _cdiv(a, b):
    return -(-a // b)


def addnorm_kernel(x_ref, y_ref, g_ref, b_ref, o_ref, *, d_valid, d_padded):
    # "Add" in f32 for numerics.
    s = x_ref[...].astype(jnp.float32) + y_ref[...].astype(jnp.float32)

    inv_d = 1.0 / d_valid
    # Padded lanes (if any) are zero on input, so this is already the valid sum.
    mean = jnp.sum(s, axis=-1, keepdims=True) * inv_d
    centered = s - mean

    ssq = jnp.sum(centered * centered, axis=-1, keepdims=True)
    if d_padded != d_valid:
        # Each of the (d_padded - d_valid) zero lanes contributed mean^2 to the
        # sum of squares; subtract that as a per-row scalar instead of masking.
        ssq = ssq - (d_padded - d_valid) * (mean * mean)

    var = ssq * inv_d                      # biased variance, like PyTorch
    inv = jax.lax.rsqrt(var + EPS)

    # gamma/beta arrive already in f32 from the wrapper; fuse scale+shift.
    # Padded lanes get garbage here (gamma/beta are 0 there) and are sliced off
    # in the wrapper; padded rows of the last partial block are never stored.
    o_ref[...] = (centered * (inv * g_ref[...]) + b_ref[...]).astype(o_ref.dtype)


def _vmem_sizes():
    """(tile budget bytes, vmem_limit_bytes) keyed off physical VMEM."""
    cap = None
    try:
        cap = pltpu.get_tpu_info().vmem_capacity_bytes
    except Exception:
        cap = None
    if cap is not None and cap >= (128 << 20):
        return 64 << 20, 96 << 20          # v5e / v6e: 128 MiB physical
    return 28 << 20, 40 << 20              # v7x (64 MiB physical) / unknown: stay safe


def _pick_tile_rows(m_rows, d_pad, itemsize, pack, budget):
    # Per-row VMEM: (2 inputs + 1 output) x 2 pipeline buffers at the I/O dtype,
    # plus ~3 full-tile f32 temporaries (s, centered, output staging/broadcasts).
    bytes_per_row = 3 * 2 * d_pad * itemsize + 3 * d_pad * 4
    tm = budget // max(bytes_per_row, 1)
    tm = max(pack, min(tm, 1024))
    tm = (tm // pack) * pack
    # Never exceed one (possibly partial) block over all rows.
    tm = min(tm, _round_up(m_rows, pack))

    # Aim for >= 4 grid steps (>= 2 per TensorCore on dual-TC parts) when the
    # row count allows real pipelining.
    min_steps = 4
    if m_rows > min_steps * pack and _cdiv(m_rows, tm) < min_steps:
        tm = max(pack, _round_up(_cdiv(m_rows, min_steps), pack))

    # Prefer an even step count (2-TC load balance) when it costs nothing.
    steps = _cdiv(m_rows, tm)
    if steps > 1 and steps % 2 == 1:
        tm_even = max(pack, _round_up(_cdiv(m_rows, steps + 1), pack))
        if _cdiv(m_rows, tm_even) % 2 == 0:
            tm = tm_even
    return tm


def add_norm(x, sublayer_x, gamma, beta, *, tile_rows=None):
    assert x.shape == sublayer_x.shape
    D = x.shape[-1]
    assert gamma.shape == (D,) and beta.shape == (D,)

    orig_shape = x.shape
    x2 = x.reshape(-1, D)
    y2 = sublayer_x.reshape(-1, D)
    M = x2.shape[0]

    # Lane-dense hidden dim: pad to a multiple of 128 (no-op for typical sizes).
    D_pad = _round_up(D, 128)

    itemsize = jnp.dtype(x.dtype).itemsize
    pack = 8 * max(1, 4 // itemsize)  # 8 rows f32, 16 bf16, 32 int8

    budget, vmem_limit = _vmem_sizes()
    if tile_rows is None:
        tm = _pick_tile_rows(M, D_pad, itemsize, pack, budget)
    else:
        tm = tile_rows
    tm = max(pack, (tm // pack) * pack)

    # cdiv grid over UNPADDED rows: Pallas masks writeback of the partial block.
    grid = (_cdiv(M, tm),)

    if D_pad != D:
        # Zero-pad lanes only (rare: D % 128 != 0); the kernel's scalar
        # correction relies on padded lanes being exactly zero.
        x2 = jnp.pad(x2, ((0, 0), (0, D_pad - D)))
        y2 = jnp.pad(y2, ((0, 0), (0, D_pad - D)))

    g2 = jnp.pad(gamma.astype(jnp.float32), (0, D_pad - D)).reshape(1, D_pad)
    b2 = jnp.pad(beta.astype(jnp.float32), (0, D_pad - D)).reshape(1, D_pad)

    kernel = functools.partial(addnorm_kernel, d_valid=D, d_padded=D_pad)

    out2 = pl.pallas_call(
        kernel,
        out_shape=jax.ShapeDtypeStruct((M, D_pad), x.dtype),
        grid_spec=pltpu.PrefetchScalarGridSpec(
            num_scalar_prefetch=0,
            grid=grid,
            in_specs=[
                pl.BlockSpec((tm, D_pad), lambda i: (i, 0)),
                pl.BlockSpec((tm, D_pad), lambda i: (i, 0)),
                pl.BlockSpec((1, D_pad), lambda i: (0, 0)),  # gamma: VMEM-resident
                pl.BlockSpec((1, D_pad), lambda i: (0, 0)),  # beta:  VMEM-resident
            ],
            out_specs=pl.BlockSpec((tm, D_pad), lambda i: (i, 0)),
        ),
        compiler_params=pltpu.CompilerParams(
            dimension_semantics=("parallel",),
            vmem_limit_bytes=vmem_limit,
        ),
    )(x2, y2, g2, b2)

    if D_pad != D:
        out2 = out2[:, :D]
    return out2.reshape(orig_shape)


def _reference(x, sublayer_x, gamma, beta):
    s = (x + sublayer_x).astype(jnp.float32)
    mean = jnp.mean(s, axis=-1, keepdims=True)
    var = jnp.mean((s - mean) ** 2, axis=-1, keepdims=True)
    return ((s - mean) / jnp.sqrt(var + EPS) * gamma + beta).astype(x.dtype)


if __name__ == "__main__":
    key = jax.random.PRNGKey(0)
    k1, k2, k3, k4 = jax.random.split(key, 4)

    # Small shapes consistent with the module: [batch, seq, hidden], norm over hidden.
    batch, seq, hidden = 2, 8, 32
    x = jax.random.normal(k1, (batch, seq, hidden), dtype=jnp.float32)
    sublayer_x = jax.random.normal(k2, (batch, seq, hidden), dtype=jnp.float32)
    # PyTorch LayerNorm default init: weight=1, bias=0.
    gamma = jnp.ones((hidden,), dtype=jnp.float32)
    beta = jnp.zeros((hidden,), dtype=jnp.float32)

    out = add_norm(x, sublayer_x, gamma, beta)
    jax.block_until_ready(out)
    ref = _reference(x, sublayer_x, gamma, beta)
    assert jnp.allclose(out, ref, atol=1e-5, rtol=1e-5), "mismatch vs reference (case 1)"

    # Second check: M not a multiple of the tile (partial-block masked writeback)
    # plus a lane-padded hidden dim and non-trivial gamma/beta.
    b2s, s2s, h2s = 3, 5, 96
    xb = jax.random.normal(k3, (b2s, s2s, h2s), dtype=jnp.float32)
    yb = jax.random.normal(k4, (b2s, s2s, h2s), dtype=jnp.float32)
    gb = 1.0 + 0.01 * jnp.arange(h2s, dtype=jnp.float32)
    bb = 0.1 * jnp.ones((h2s,), dtype=jnp.float32)
    out_b = add_norm(xb, yb, gb, bb)
    jax.block_until_ready(out_b)
    ref_b = _reference(xb, yb, gb, bb)
    assert jnp.allclose(out_b, ref_b, atol=1e-5, rtol=1e-5), "mismatch vs reference (case 2)"

    print("KERNEL_OK")
</pallas_src>

<mosaic_0001>
module attributes {stable_mosaic.version = 11 : i64} {
  func.func @addnorm_kernel(%arg0: i32, %arg1: memref<16x128xf32, #tpu.memory_space<vmem>>, %arg2: memref<16x128xf32, #tpu.memory_space<vmem>>, %arg3: memref<1x128xf32, #tpu.memory_space<vmem>>, %arg4: memref<1x128xf32, #tpu.memory_space<vmem>>, %arg5: memref<16x128xf32, #tpu.memory_space<vmem>>) attributes {dimension_semantics = [#tpu.dimension_semantics<parallel>], iteration_bounds = array<i64: 1>, scalar_prefetch = 0 : i64, scratch_operands = 0 : i64, tpu.core_type = #tpu.core_type<tc>, window_params = [{transform_indices = @transform_0, window_bounds = array<i64: 16, 128>}, {transform_indices = @transform_1, window_bounds = array<i64: 16, 128>}, {pipeline_mode = #tpu.pipeline_mode<synchronous>, transform_indices = @transform_2, window_bounds = array<i64: 1, 128>}, {pipeline_mode = #tpu.pipeline_mode<synchronous>, transform_indices = @transform_3, window_bounds = array<i64: 1, 128>}, {transform_indices = @transform_4, window_bounds = array<i64: 16, 128>}]} {
    %c0 = arith.constant 0 : index
    %c0_0 = arith.constant 0 : index
    %0 = vector.load %arg1[%c0, %c0_0] : memref<16x128xf32, #tpu.memory_space<vmem>>, vector<16x128xf32>
    %c0_1 = arith.constant 0 : index
    %c0_2 = arith.constant 0 : index
    %1 = vector.load %arg2[%c0_1, %c0_2] : memref<16x128xf32, #tpu.memory_space<vmem>>, vector<16x128xf32>
    %2 = arith.addf %0, %1 : vector<16x128xf32>
    %cst = arith.constant dense<0.000000e+00> : vector<16xf32>
    %3 = vector.multi_reduction <add>, %2, %cst [1] : vector<16x128xf32> to vector<16xf32>
    %4 = vector.shape_cast %3 : vector<16xf32> to vector<16x1xf32>
    %cst_3 = arith.constant 3.125000e-02 : f32
    %5 = vector.broadcast %cst_3 : f32 to vector<16x1xf32>
    %6 = arith.mulf %4, %5 : vector<16x1xf32>
    %7 = vector.broadcast %6 : vector<16x1xf32> to vector<16x128xf32>
    %8 = arith.subf %2, %7 : vector<16x128xf32>
    %9 = arith.mulf %8, %8 : vector<16x128xf32>
    %cst_4 = arith.constant dense<0.000000e+00> : vector<16xf32>
    %10 = vector.multi_reduction <add>, %9, %cst_4 [1] : vector<16x128xf32> to vector<16xf32>
    %11 = vector.shape_cast %10 : vector<16xf32> to vector<16x1xf32>
    %12 = arith.mulf %6, %6 : vector<16x1xf32>
    %cst_5 = arith.constant 9.600000e+01 : f32
    %13 = vector.broadcast %cst_5 : f32 to vector<16x1xf32>
    %14 = arith.mulf %13, %12 : vector<16x1xf32>
    %15 = arith.subf %11, %14 : vector<16x1xf32>
    %cst_6 = arith.constant 3.125000e-02 : f32
    %16 = vector.broadcast %cst_6 : f32 to vector<16x1xf32>
    %17 = arith.mulf %15, %16 : vector<16x1xf32>
    %cst_7 = arith.constant 9.99999974E-6 : f32
    %18 = vector.broadcast %cst_7 : f32 to vector<16x1xf32>
    %19 = arith.addf %17, %18 : vector<16x1xf32>
    %20 = math.rsqrt %19 : vector<16x1xf32>
    %c0_8 = arith.constant 0 : index
    %c0_9 = arith.constant 0 : index
    %21 = vector.load %arg3[%c0_8, %c0_9] : memref<1x128xf32, #tpu.memory_space<vmem>>, vector<1x128xf32>
    %22 = vector.broadcast %20 : vector<16x1xf32> to vector<16x128xf32>
    %23 = vector.broadcast %21 : vector<1x128xf32> to vector<16x128xf32>
    %24 = arith.mulf %22, %23 : vector<16x128xf32>
    %25 = arith.mulf %8, %24 : vector<16x128xf32>
    %c0_10 = arith.constant 0 : index
    %c0_11 = arith.constant 0 : index
    %26 = vector.load %arg4[%c0_10, %c0_11] : memref<1x128xf32, #tpu.memory_space<vmem>>, vector<1x128xf32>
    %27 = vector.broadcast %26 : vector<1x128xf32> to vector<16x128xf32>
    %28 = arith.addf %25, %27 : vector<16x128xf32>
    %c0_12 = arith.constant 0 : index
    %c0_13 = arith.constant 0 : index
    %29 = vector.load %arg5[%c0_12, %c0_13] : memref<16x128xf32, #tpu.memory_space<vmem>>, vector<16x128xf32>
    tpu.vector_store %arg5[%c0_12, %c0_13], %28 {strides = array<i32>} : memref<16x128xf32, #tpu.memory_space<vmem>>, vector<16x128xf32>,
    return
  }
  func.func @transform_0(%arg0: i32) -> (i32, i32) {
    %c0_i32 = arith.constant 0 : i32
    %c0_i32_0 = arith.constant 0 : i32
    return %arg0, %c0_i32 : i32, i32
  }
  func.func @transform_1(%arg0: i32) -> (i32, i32) {
    %c0_i32 = arith.constant 0 : i32
    %c0_i32_0 = arith.constant 0 : i32
    return %arg0, %c0_i32 : i32, i32
  }
  func.func @transform_2(%arg0: i32) -> (i32, i32) {
    %c0_i32 = arith.constant 0 : i32
    %c0_i32_0 = arith.constant 0 : i32
    %c0_i32_1 = arith.constant 0 : i32
    return %c0_i32, %c0_i32_0 : i32, i32
  }
  func.func @transform_3(%arg0: i32) -> (i32, i32) {
    %c0_i32 = arith.constant 0 : i32
    %c0_i32_0 = arith.constant 0 : i32
    %c0_i32_1 = arith.constant 0 : i32
    return %c0_i32, %c0_i32_0 : i32, i32
  }
  func.func @transform_4(%arg0: i32) -> (i32, i32) {
    %c0_i32 = arith.constant 0 : i32
    %c0_i32_0 = arith.constant 0 : i32
    return %arg0, %c0_i32 : i32, i32
  }
}

</mosaic_0001>

<llo_original>
// kernel: tpu_custom_call.1
$region0: #{tpu_custom_call.1}
  #allocation0 [shape = 'u32[]', space=smem, size = 0x4, offset = 0x4, fixed_abs, tag = 'smem constant byte address 0x4 - core index']
  #allocation1 [shape = 'u32[72,128]{1,0:T(1,128)}', space=vmem, size = 0x9000, scoped, tag = 'internal scratch']
  %s0 = inlined_call_operand.hbm [shape: f32[16,128], index: 0, kind: input, shape index: {}]
  %s1 = inlined_call_operand.hbm [shape: f32[16,128], index: 1, kind: input, shape index: {}]
  %s2 = inlined_call_operand.vmem [shape: f32[1,128], index: 2, kind: input, shape index: {}]
  %s3 = inlined_call_operand.vmem [shape: f32[1,128], index: 3, kind: input, shape index: {}]
  %s4 = inlined_call_operand.hbm [shape: f32[16,128], index: 4, kind: output, shape index: {}]
  %s5 = sld [smem:[#allocation0]]
  $region34: #{tpu_custom_call.1} parent=0
    _
  %s7 = ssub.s32 1, %s5
  %s8 = scalar_select 0, %s7, %s5
  $region1: #{tpu_custom_call.1} parent=0
    #allocation2 [shape = 'u8[8192]{0}', space=vmem, size = 0x2000, scoped, tag = 'input window, operand 0, single buffered']
    #allocation3 [shape = 's32[1]{0}', space=sflag, size = 0x4, scoped, tag = 'scoped memory for tpu_custom_call.1']
    #allocation4 [shape = 's32[1]{0}', space=sflag, size = 0x4, scoped, tag = 'scoped memory for tpu_custom_call.1']
    #allocation5 [shape = 'u8[8192]{0}', space=vmem, size = 0x2000, scoped, tag = 'input window, operand 1, single buffered']
    #allocation6 [shape = 's32[1]{0}', space=sflag, size = 0x4, scoped, tag = 'scoped memory for tpu_custom_call.1']
    #allocation7 [shape = 'u8[8192]{0}', space=vmem, size = 0x2000, scoped, tag = 'output window, operand 0, single buffered']
    %9 = vsyncpa [#allocation3], 0
    %10 = vsyncpa [#allocation6], 0
    %11 = vsyncpa [#allocation4], 0
    // Predicated region
    $region2: #{tpu_custom_call.1} parent=1 // pred_check
      _
    $region3: #{tpu_custom_call.1} parent=1 // pred_check_branch
      %13 = sbr.rel (0) target = $region5
    $region4: #{tpu_custom_call.1} parent=1 // pred_region
      %15 = vsyncadd [#allocation3], 0
      %s16 = sshll.u32 %s0, 4
      %s17 = int_to_ptr.hbm [resolvable:$true] %s16
      %s18 = sshll.u32 [#allocation2], 4
      %s19 = int_to_ptr.vmem [resolvable:$true] %s18
      %24 = dma.hbm_to_vmem [thread:$0]  %s17, 256, %s19, [#allocation3], 128, 128, 8
    $region5: #{tpu_custom_call.1} parent=1 // pred_fallthru
      _
    // Predicated region
    $region6: #{tpu_custom_call.1} parent=1 // pred_check
      _
    $region7: #{tpu_custom_call.1} parent=1 // pred_check_branch
      %26 = sbr.rel (0) target = $region9
    $region8: #{tpu_custom_call.1} parent=1 // pred_region
      %28 = vsyncadd [#allocation6], 0
      %s29 = sshll.u32 %s1, 4
      %s30 = int_to_ptr.hbm [resolvable:$true] %s29
      %s31 = sshll.u32 [#allocation5], 4
      %s32 = int_to_ptr.vmem [resolvable:$true] %s31
      %37 = dma.hbm_to_vmem [thread:$0]  %s30, 256, %s32, [#allocation6], 128, 128, 8
    $region9: #{tpu_custom_call.1} parent=1 // pred_fallthru
      _
    // Predicated region
    $region10: #{tpu_custom_call.1} parent=1 // pred_check
      _
    $region11: #{tpu_custom_call.1} parent=1 // pred_check_branch
      %39 = sbr.rel (0) target = $region13
    $region12: #{tpu_custom_call.1} parent=1 // pred_region
      _
    $region13: #{tpu_custom_call.1} parent=1 // pred_fallthru
      _
    // Predicated region
    $region14: #{tpu_custom_call.1} parent=1 // pred_check
      _
    $region15: #{tpu_custom_call.1} parent=1 // pred_check_branch
      %41 = sbr.rel (0) target = $region17
    $region16: #{tpu_custom_call.1} parent=1 // pred_region
      _
    $region17: #{tpu_custom_call.1} parent=1 // pred_fallthru
      _
    // Predicated region
    $region18: #{tpu_custom_call.1} parent=1 // pred_check
      _
    $region19: #{tpu_custom_call.1} parent=1 // pred_check_branch
      %43 = sbr.rel (0) target = $region21
    $region20: #{tpu_custom_call.1} parent=1 // pred_region
      %45 = dma.done [#allocation3], 256
    $region21: #{tpu_custom_call.1} parent=1 // pred_fallthru
      _
    // Predicated region
    $region22: #{tpu_custom_call.1} parent=1 // pred_check
      _
    $region23: #{tpu_custom_call.1} parent=1 // pred_check_branch
      %47 = sbr.rel (0) target = $region25
    $region24: #{tpu_custom_call.1} parent=1 // pred_region
      %49 = dma.done [#allocation6], 256
    $region25: #{tpu_custom_call.1} parent=1 // pred_fallthru
      _
    %v50 = vld [vmem:[#allocation2] sm:$0xff]
    %v51 = vld [vmem:[#allocation2 + $0x8] sm:$0xff]
    %v52 = vld [vmem:[#allocation5] sm:$0xff]
    %v53 = vld [vmem:[#allocation5 + $0x8] sm:$0xff]
    %v54 = vadd.f32 %v50, %v52
    %v55 = vadd.f32 %v51, %v53
    %56 = vadd.xlane.f32.xlu0 %v54
    %v57 = vpop.xlane.xlu0 %56
    %58 = vadd.xlane.f32.xlu0 %v55
    %v59 = vpop.xlane.xlu0 %58
    %v60 = vmul.f32 %v57, 0.03125
    %v61 = vmul.f32 %v59, 0.03125
    %v62 = vsub.f32 %v54, %v60
    %v63 = vsub.f32 %v55, %v61
    %v64 = vmul.f32 %v62, %v62
    %v65 = vmul.f32 %v63, %v63
    %66 = vadd.xlane.f32.xlu0 %v64
    %v67 = vpop.xlane.xlu0 %66
    %68 = vadd.xlane.f32.xlu0 %v65
    %v69 = vpop.xlane.xlu0 %68
    %v70 = vmul.f32 %v60, %v60
    %v71 = vmul.f32 %v61, %v61
    %v72 = vmul.f32 %v70, 96.0
    %v73 = vmul.f32 %v71, 96.0
    %v74 = vsub.f32 %v67, %v72
    %v75 = vsub.f32 %v69, %v73
    %v76 = vmul.f32 %v74, 0.03125
    %v77 = vmul.f32 %v75, 0.03125
    %v78 = vadd.f32 %v76, 1e-05
    %v79 = vadd.f32 %v77, 1e-05
    %v80 = vrsqrt.pop %v78
    %v81 = vmul.f32 %v80, %v78
    %v82 = vmul.f32 %v81, %v80
    %v83 = vmul.f32 0.5, %v82
    %v84 = vsub.f32 1.5, %v83
    %v85 = vmul.f32 %v80, %v84
    %vm86 = vweird.f32 %v78
    %vm87 = vweird.f32 %v80
    %vm88 = vmor %vm86, %vm87
    %v89 = vsel %vm88, %v80, %v85
    %v90 = vrsqrt.pop %v79
    %v91 = vmul.f32 %v90, %v79
    %v92 = vmul.f32 %v91, %v90
    %v93 = vmul.f32 0.5, %v92
    %v94 = vsub.f32 1.5, %v93
    %v95 = vmul.f32 %v90, %v94
    %vm96 = vweird.f32 %v79
    %vm97 = vweird.f32 %v90
    %vm98 = vmor %vm96, %vm97
    %v99 = vsel %vm98, %v90, %v95
    %v100 = vld [vmem:[%s2] sm:$0x1]
    %v102 = vperm.slane %v100, 0
    %v104 = vmul.f32 %v89, %v102
    %v105 = vmul.f32 %v99, %v102
    %v106 = vmul.f32 %v62, %v104
    %v107 = vmul.f32 %v63, %v105
    %v108 = vld [vmem:[%s3] sm:$0x1]
    %v110 = vperm.slane %v108, 0
    %v112 = vadd.f32 %v106, %v110
    %v113 = vadd.f32 %v107, %v110
    %114 = vst [vmem:[#allocation7] sm:$0xff] %v112
    %115 = vst [vmem:[#allocation7 + $0x8] sm:$0xff] %v113
    // Predicated region
    $region26: #{tpu_custom_call.1} parent=1 // pred_check
      _
    $region27: #{tpu_custom_call.1} parent=1 // pred_check_branch
      %117 = sbr.rel (0) target = $region29
    $region28: #{tpu_custom_call.1} parent=1 // pred_region
      %119 = vsyncadd [#allocation4], 0
      %s120 = sshll.u32 [#allocation7], 4
      %s121 = int_to_ptr.vmem [resolvable:$true] %s120
      %s122 = sshll.u32 %s4, 4
      %s123 = int_to_ptr.hbm [resolvable:$true] %s122
      %128 = dma.vmem_to_hbm [thread:$0]  %s121, 256, %s123, [#allocation4], 128, 128, 8
    $region29: #{tpu_custom_call.1} parent=1 // pred_fallthru
      _
    // Predicated region
    $region30: #{tpu_custom_call.1} parent=1 // pred_check
      _
    $region31: #{tpu_custom_call.1} parent=1 // pred_check_branch
      %130 = sbr.rel (0) target = $region33
    $region32: #{tpu_custom_call.1} parent=1 // pred_region
      %132 = dma.done [#allocation4], 256
    $region33: #{tpu_custom_call.1} parent=1 // pred_fallthru
      _
    %133 = vsyncpa [#allocation3], 1
    %134 = vsyncpa [#allocation6], 1
    %135 = vsyncpa [#allocation4], 1

</llo_original>
